<compile_context>
chip_gen: v7x
topology: tpu7x:2x2x1
jax: 0.10.0
libtpu: 0.0.40
codegen_flags: <defaults>
</compile_context>

<pallas_src>
import functools
import math

import jax
import jax.numpy as jnp
from jax.experimental import pallas as pl
from jax.experimental.pallas import tpu as pltpu


# ---------------------------------------------------------------------------
# Kernel: one MXU matmul + bias per grid step. `lhs_contract` selects which lhs
# dim is contracted with dim 0 of the weight:
#   folded path: lhs (tile_m, k*C), contract dim 1 -> (tile_m, k*D)  (lane-dense)
#   direct path: lhs (C, tile_s),   contract dim 0 -> (tile_s, D)
# ---------------------------------------------------------------------------
def _proj_kernel(x_ref, w_ref, b_ref, o_ref, *, lhs_contract):
    y = jax.lax.dot_general(
        x_ref[...], w_ref[...],
        dimension_numbers=(((lhs_contract,), (0,)), ((), ())),
        preferred_element_type=jnp.float32,
    )
    o_ref[...] = (y + b_ref[...].astype(jnp.float32)).astype(o_ref.dtype)


def prepare_params(weight, bias):
    """One-time parameter prep (hoisted out of the per-call path).

    torch.nn.Linear stores weight as (out_size, in_size); pre-transpose to
    (in_size, out_size) and reshape bias to (1, out_size) exactly once.
    """
    w_cd = jnp.asarray(weight).T             # (C, D)
    b_1d = jnp.asarray(bias).reshape(1, -1)  # (1, D)
    return w_cd, b_1d


@functools.lru_cache(maxsize=None)
def _vmem_capacity_bytes():
    try:
        return int(pltpu.get_tpu_info().vmem_capacity_bytes)
    except Exception:                       # conservative default = v7x (64 MiB)
        return 64 * 1024 * 1024


def _fold_factor(C, D, S):
    """Smallest k with (k*D) % 128 == 0, grown (while it still divides S) until
    the folded input lane dim k*C is reasonably wide and block_diag_k(W) stays
    tiny."""
    k = math.lcm(D, 128) // D
    if k == 1 or S % k:
        return k
    while S % (2 * k) == 0 and k * C < 32 and k * D < 256:
        k *= 2
    return k


def _pick_rows(total, row_bytes, budget_bytes, granularity, min_steps, cap=2048):
    """Largest row tile (multiple of `granularity`, <= cap) whose double-buffered
    in+out footprint fits `budget_bytes`, keeping >= `min_steps` grid steps when
    `total` allows (so both v7x TensorCores get work)."""
    t = budget_bytes // max(1, 2 * row_bytes)     # 2x: double-buffered in + out
    t = min(t, cap, total)
    if total >= min_steps * granularity:
        t = min(t, -(-total // min_steps))        # ceil(total / min_steps)
    return max(granularity, (t // granularity) * granularity)


# ---------------------------------------------------------------------------
# Folded (lane-dense) path: D < 128, S divisible by the fold factor.
# ---------------------------------------------------------------------------
@functools.partial(jax.jit, static_argnames=("k", "tile_m", "vmem_limit"))
def _encode_folded_impl(x, w_cd, b_1d, *, k, tile_m, vmem_limit):
    B, C, H, W = x.shape
    S = H * W
    D = w_cd.shape[1]
    Sf, F, N = S // k, k * C, k * D
    M = B * Sf

    # (B, C, S) -> (B*Sf, k*C): one small XLA transpose over the input
    # (~C/D of the output bytes); makes the kernel a plain lane-dense matmul.
    xr = jnp.transpose(x.reshape(B, C, Sf, k), (0, 2, 3, 1)).reshape(M, F)
    # Block-diagonal weight (k copies of W) and k-tiled bias, built from the
    # tiny (C, D) / (1, D) params each call.
    w_big = jnp.kron(jnp.eye(k, dtype=w_cd.dtype), w_cd)            # (F, N)
    b_big = jnp.tile(b_1d, (1, k))                                   # (1, N)

    m_pad = pl.cdiv(M, tile_m) * tile_m
    if m_pad != M:   # ragged / prime B*Sf: pad rows instead of shrinking tiles
        xr = jnp.pad(xr, ((0, m_pad - M), (0, 0)))

    isz = x.dtype.itemsize
    wsz = w_cd.dtype.itemsize
    cost = pl.CostEstimate(
        flops=2 * M * F * N,
        transcendentals=0,
        bytes_accessed=M * F * isz + F * N * wsz + M * N * isz,
    )

    out2d = pl.pallas_call(
        functools.partial(_proj_kernel, lhs_contract=1),
        out_shape=jax.ShapeDtypeStruct((m_pad, N), x.dtype),
        grid_spec=pltpu.PrefetchScalarGridSpec(
            num_scalar_prefetch=0,
            grid=(m_pad // tile_m,),
            in_specs=[
                pl.BlockSpec((tile_m, F), lambda i: (i, 0)),
                pl.BlockSpec((F, N), lambda i: (0, 0)),   # weight: resident
                pl.BlockSpec((1, N), lambda i: (0, 0)),   # bias:   resident
            ],
            out_specs=pl.BlockSpec((tile_m, N), lambda i: (i, 0)),
        ),
        compiler_params=pltpu.CompilerParams(
            dimension_semantics=("parallel",),
            vmem_limit_bytes=vmem_limit,
        ),
        cost_estimate=cost,
    )(xr, w_big, b_big)

    # (B*Sf, k*D) -> (B, S, D): pure row-major reshape, free.
    return out2d[:M].reshape(B, Sf, k, D).reshape(B, S, D)


# ---------------------------------------------------------------------------
# Direct path: D already a multiple of 128, or S not foldable.
# ---------------------------------------------------------------------------
@functools.partial(jax.jit, static_argnames=("tile_s", "vmem_limit"))
def _encode_direct_impl(x, w_cd, b_1d, *, tile_s, vmem_limit):
    B, C, H, W = x.shape
    S = H * W
    D = w_cd.shape[1]
    x_bcs = x.reshape(B, C, S)               # flatten(start_dim=2): free

    isz = x.dtype.itemsize
    cost = pl.CostEstimate(
        flops=2 * B * S * C * D,
        transcendentals=0,
        bytes_accessed=B * C * S * isz + C * D * w_cd.dtype.itemsize
        + B * S * D * isz,
    )

    return pl.pallas_call(
        functools.partial(_proj_kernel, lhs_contract=0),
        out_shape=jax.ShapeDtypeStruct((B, S, D), x.dtype),
        grid_spec=pltpu.PrefetchScalarGridSpec(
            num_scalar_prefetch=0,
            grid=(B, S // tile_s),
            in_specs=[
                pl.BlockSpec((None, C, tile_s), lambda b, s: (b, 0, s)),
                pl.BlockSpec((C, D), lambda b, s: (0, 0)),
                pl.BlockSpec((1, D), lambda b, s: (0, 0)),
            ],
            out_specs=pl.BlockSpec((None, tile_s, D), lambda b, s: (b, s, 0)),
        ),
        compiler_params=pltpu.CompilerParams(
            dimension_semantics=("parallel", "parallel"),
            vmem_limit_bytes=vmem_limit,
        ),
        cost_estimate=cost,
    )(x_bcs, w_cd, b_1d)


def encode_for_attention(x, w_cd, b_1d):
    """x: (B, C, H, W); w_cd: (C, D) pre-transposed weight; b_1d: (1, D).

    Returns (B, H*W, D) == Linear(permute(flatten(x, 2), (0, 2, 1))).
    I/O dtype follows x / w_cd -- pass bf16 operands to halve HBM traffic
    (that, not in-kernel casting, is where the bandwidth win is).
    """
    B, C, H, W = x.shape
    S = H * W
    D = w_cd.shape[1]
    isz = jnp.dtype(x.dtype).itemsize
    wsz = jnp.dtype(w_cd.dtype).itemsize

    cap = _vmem_capacity_bytes()                    # 128 MiB v5e/v6e, 64 MiB v7x
    vmem_limit = int(min(cap // 2, 64 * 1024 * 1024))
    budget = cap // 4                               # tiles sized to ~half the limit

    k = _fold_factor(C, D, S)
    if k > 1 and S % k == 0:
        F, N = k * C, k * D
        budget_eff = max(1 << 20, budget - F * N * wsz)
        tile_m = _pick_rows(B * (S // k), (F + N) * isz, budget_eff,
                            granularity=8, min_steps=2)
        return _encode_folded_impl(x, w_cd, b_1d, k=k, tile_m=tile_m,
                                   vmem_limit=vmem_limit)

    # D already lane-dense, or S not divisible by the fold factor.
    if S % 128 == 0:
        budget_eff = max(1 << 20, budget - C * D * wsz)
        tile_s = _pick_rows(S, (C + D) * isz, budget_eff,
                            granularity=128, min_steps=2 if B == 1 else 1)
        while S % tile_s:
            tile_s -= 128
    else:
        tile_s = S
    return _encode_direct_impl(x, w_cd, b_1d, tile_s=tile_s,
                               vmem_limit=vmem_limit)


if __name__ == "__main__":
    # Small shapes consistent with the module: B=2, C=in_size=4, H=W=16,
    # out_size=32  ->  output (2, 256, 32)
    B, C, H, W = 2, 4, 16, 16
    in_size, out_size = C, 32

    key = jax.random.PRNGKey(0)
    kx, kw, kb = jax.random.split(key, 3)

    x = jax.random.normal(kx, (B, C, H, W), dtype=jnp.float32)
    # Deterministic synthetic Linear params (torch convention: weight (out, in))
    bound = 1.0 / (in_size ** 0.5)
    weight = jax.random.uniform(kw, (out_size, in_size), jnp.float32, -bound, bound)
    bias = jax.random.uniform(kb, (out_size,), jnp.float32, -bound, bound)

    # One-time param prep (hoisted transpose/reshape), then the kernel call.
    w_cd, b_1d = prepare_params(weight, bias)
    out = jax.block_until_ready(encode_for_attention(x, w_cd, b_1d))

    # Reference check (plain JAX, mirrors the PyTorch forward; f32 accumulation)
    ref = jnp.einsum("bcs,dc->bsd", x.reshape(B, C, H * W), weight,
                     precision=jax.lax.Precision.HIGHEST) + bias
    assert out.shape == (B, H * W, out_size)
    assert jnp.allclose(out, ref, atol=1e-5, rtol=1e-5)

    print("KERNEL_OK")
</pallas_src>

<mosaic_0001>
module attributes {stable_mosaic.version = 11 : i64} {
  func.func @_proj_kernel(%arg0: i32, %arg1: memref<32x32xf32, #tpu.memory_space<vmem>>, %arg2: memref<32x256xf32, #tpu.memory_space<vmem>>, %arg3: memref<1x256xf32, #tpu.memory_space<vmem>>, %arg4: memref<32x256xf32, #tpu.memory_space<vmem>>) attributes {dimension_semantics = [#tpu.dimension_semantics<parallel>], iteration_bounds = array<i64: 2>, scalar_prefetch = 0 : i64, scratch_operands = 0 : i64, tpu.core_type = #tpu.core_type<tc>, window_params = [{transform_indices = @transform_0, window_bounds = array<i64: 32, 32>}, {pipeline_mode = #tpu.pipeline_mode<synchronous>, transform_indices = @transform_1, window_bounds = array<i64: 32, 256>}, {pipeline_mode = #tpu.pipeline_mode<synchronous>, transform_indices = @transform_2, window_bounds = array<i64: 1, 256>}, {transform_indices = @transform_3, window_bounds = array<i64: 32, 256>}]} {
    %c0 = arith.constant 0 : index
    %c0_0 = arith.constant 0 : index
    %0 = vector.load %arg1[%c0, %c0_0] : memref<32x32xf32, #tpu.memory_space<vmem>>, vector<32x32xf32>
    %c0_1 = arith.constant 0 : index
    %c0_2 = arith.constant 0 : index
    %1 = vector.load %arg2[%c0_1, %c0_2] : memref<32x256xf32, #tpu.memory_space<vmem>>, vector<32x256xf32>
    %cst = arith.constant dense<0.000000e+00> : vector<32x256xf32>
    %2 = tpu.matmul %0, %1, %cst {dimension_numbers = #tpu.dot_dimension_numbers<[1], [0], [0], [1], [0, 0, 1, 1], [], []>} : vector<32x32xf32>, vector<32x256xf32>, vector<32x256xf32> -> vector<32x256xf32>
    %c0_3 = arith.constant 0 : index
    %c0_4 = arith.constant 0 : index
    %3 = vector.load %arg3[%c0_3, %c0_4] : memref<1x256xf32, #tpu.memory_space<vmem>>, vector<1x256xf32>
    %4 = vector.broadcast %3 : vector<1x256xf32> to vector<32x256xf32>
    %5 = arith.addf %2, %4 : vector<32x256xf32>
    %c0_5 = arith.constant 0 : index
    %c0_6 = arith.constant 0 : index
    %6 = vector.load %arg4[%c0_5, %c0_6] : memref<32x256xf32, #tpu.memory_space<vmem>>, vector<32x256xf32>
    tpu.vector_store %arg4[%c0_5, %c0_6], %5 {strides = array<i32>} : memref<32x256xf32, #tpu.memory_space<vmem>>, vector<32x256xf32>,
    return
  }
  func.func @transform_0(%arg0: i32) -> (i32, i32) {
    %c0_i32 = arith.constant 0 : i32
    %c0_i32_0 = arith.constant 0 : i32
    return %arg0, %c0_i32 : i32, i32
  }
  func.func @transform_1(%arg0: i32) -> (i32, i32) {
    %c0_i32 = arith.constant 0 : i32
    %c0_i32_0 = arith.constant 0 : i32
    %c0_i32_1 = arith.constant 0 : i32
    return %c0_i32, %c0_i32_0 : i32, i32
  }
  func.func @transform_2(%arg0: i32) -> (i32, i32) {
    %c0_i32 = arith.constant 0 : i32
    %c0_i32_0 = arith.constant 0 : i32
    %c0_i32_1 = arith.constant 0 : i32
    return %c0_i32, %c0_i32_0 : i32, i32
  }
  func.func @transform_3(%arg0: i32) -> (i32, i32) {
    %c0_i32 = arith.constant 0 : i32
    %c0_i32_0 = arith.constant 0 : i32
    return %arg0, %c0_i32 : i32, i32
  }
}

</mosaic_0001>

<llo_original>
// kernel: _encode_folded_impl.1
$region0: #{_encode_folded_impl.1}
  #allocation0 [shape = 'u32[]', space=smem, size = 0x4, offset = 0x4, fixed_abs, tag = 'smem constant byte address 0x4 - core index']
  #allocation1 [shape = 'u32[144,128]{1,0:T(1,128)}', space=vmem, size = 0x12000, scoped, tag = 'internal scratch']
  %s0 = inlined_call_operand.vmem [shape: f32[64,32], index: 0, kind: input, shape index: {}]
  %s1 = inlined_call_operand.vmem [shape: f32[32,256], index: 1, kind: input, shape index: {}]
  %s2 = inlined_call_operand.vmem [shape: f32[1,256], index: 2, kind: input, shape index: {}]
  %s3 = inlined_call_operand.vmem [shape: f32[64,256], index: 3, kind: output, shape index: {}]
  %s4 = sld [smem:[#allocation0]]
  $region45: #{_encode_folded_impl.1} parent=0
    _
  %s6 = ssub.s32 1, %s4
  %s7 = scalar_select 0, %s6, %s4
  loop: start=0, step=1, limit=4
  $region2: #{_encode_folded_impl.1} parent=0 // loop_pre_header
    _
  $region3: #{_encode_folded_impl.1} parent=0 // loop_header
    %s9 = sphi 0, %s13
    %p10 = scmp.ge.s32.totalorder %s9, 4
    %s19 = sphi 0, %s21
    %s22 = sphi 0, %s19
    %s23 = sphi 0, %s22
    %s39 = sphi 0, %s23
    %s43 = sphi 0, %s43
    %s45 = sphi 0, %s43
    %s46 = sphi 0, %s45
    %s60 = sphi 0, %s46
    %s64 = sphi 0, %s64
    %s66 = sphi 0, %s64
    %s67 = sphi 0, %s66
    %s81 = sphi 0, %s67
    %s87 = sphi 0, %s89
    %s90 = sphi 0, %s87
    %s91 = sphi 0, %s90
    %s107 = sphi 0, %s91
  $region4: #{_encode_folded_impl.1} parent=0 // loop_header_branch
    %12 = sbr.rel (%p10) target = $region8
  $region5: #{_encode_folded_impl.1} parent=0 // loop_body
    %s14 = ssub.s32 %s9, 1
    %s15 = ssub.s32 %s9, 2
    %s16 = sadd.s32 %s9, 1
    %s17 = ssub.s32 %s9, %s16
    %p18 = scmp.eq.s32.totalorder %s17, 0
    %s20 = sadd.s32 %s19, 1
    %s21 = scalar_select %p18, %s19, %s20
    %p24 = pneg %p18
    %p25 = scmp.eq.s32.totalorder %s9, 1
    %p26 = por %p24, %p25
    %p27 = scmp.ne.s32.totalorder %s19, %s22
    %p28 = scmp.eq.s32.totalorder %s9, 0
    %p29 = por %p27, %p28
    %p30 = scmp.ne.s32.totalorder %s19, %s22
    %p31 = scmp.eq.s32.totalorder %s14, 1
    %p32 = por %p30, %p31
    %p33 = scmp.ne.s32.totalorder %s22, %s23
    %p34 = scmp.eq.s32.totalorder %s14, 0
    %p35 = por %p33, %p34
    %p36 = scmp.ne.s32.totalorder %s22, %s23
    %p37 = scmp.eq.s32.totalorder %s15, 1
    %p38 = por %p36, %p37
    %p40 = scmp.ne.s32.totalorder %s23, %s39
    %p41 = scmp.eq.s32.totalorder %s15, 0
    %p42 = por %p40, %p41
    %s44 = sadd.s32 %s43, 1
    %p47 = scmp.eq.s32.totalorder %s9, 1
    %p48 = scmp.ne.s32.totalorder %s43, %s45
    %p49 = scmp.eq.s32.totalorder %s9, 0
    %p50 = por %p48, %p49
    %p51 = scmp.ne.s32.totalorder %s43, %s45
    %p52 = scmp.eq.s32.totalorder %s14, 1
    %p53 = por %p51, %p52
    %p54 = scmp.ne.s32.totalorder %s45, %s46
    %p55 = scmp.eq.s32.totalorder %s14, 0
    %p56 = por %p54, %p55
    %p57 = scmp.ne.s32.totalorder %s45, %s46
    %p58 = scmp.eq.s32.totalorder %s15, 1
    %p59 = por %p57, %p58
    %p61 = scmp.ne.s32.totalorder %s46, %s60
    %p62 = scmp.eq.s32.totalorder %s15, 0
    %p63 = por %p61, %p62
    %s65 = sadd.s32 %s64, 1
    %p68 = scmp.eq.s32.totalorder %s9, 1
    %p69 = scmp.ne.s32.totalorder %s64, %s66
    %p70 = scmp.eq.s32.totalorder %s9, 0
    %p71 = por %p69, %p70
    %p72 = scmp.ne.s32.totalorder %s64, %s66
    %p73 = scmp.eq.s32.totalorder %s14, 1
    %p74 = por %p72, %p73
    %p75 = scmp.ne.s32.totalorder %s66, %s67
    %p76 = scmp.eq.s32.totalorder %s14, 0
    %p77 = por %p75, %p76
    %p78 = scmp.ne.s32.totalorder %s66, %s67
    %p79 = scmp.eq.s32.totalorder %s15, 1
    %p80 = por %p78, %p79
    %p82 = scmp.ne.s32.totalorder %s67, %s81
    %p83 = scmp.eq.s32.totalorder %s15, 0
    %p84 = por %p82, %p83
    %s85 = ssub.s32 %s9, %s16
    %p86 = scmp.eq.s32.totalorder %s85, 0
    %s88 = sadd.s32 %s87, 1
    %s89 = scalar_select %p86, %s87, %s88
    %p92 = pneg %p86
    %p93 = scmp.eq.s32.totalorder %s9, 1
    %p94 = por %p92, %p93
    %p95 = scmp.ne.s32.totalorder %s87, %s90
    %p96 = scmp.eq.s32.totalorder %s9, 0
    %p97 = por %p95, %p96
    %p98 = scmp.ne.s32.totalorder %s87, %s90
    %p99 = scmp.eq.s32.totalorder %s14, 1
    %p100 = por %p98, %p99
    %p101 = scmp.ne.s32.totalorder %s90, %s91
    %p102 = scmp.eq.s32.totalorder %s14, 0
    %p103 = por %p101, %p102
    %p104 = scmp.ne.s32.totalorder %s90, %s91
    %p105 = scmp.eq.s32.totalorder %s15, 1
    %p106 = por %p104, %p105
    %p108 = scmp.ne.s32.totalorder %s91, %s107
    %p109 = scmp.eq.s32.totalorder %s15, 0
    %p110 = por %p108, %p109
    %p111 = scmp.le.s32.totalorder 1, %s9
    %p112 = scmp.lt.s32.totalorder %s9, 3
    %p113 = pnand %p111, %p112
    %p114 = pneg %p113
    // Predicated region
    $region9: #{_encode_folded_impl.1} parent=5 // pred_check
      _
    $region10: #{_encode_folded_impl.1} parent=5 // pred_check_branch
      %116 = sbr.rel (%p113) target = $region12
    $region11: #{_encode_folded_impl.1} parent=5 // pred_region
      %s117 = ssub.s32 %s9, 1
      // Predicated region
      $region13: #{_encode_folded_impl.1} parent=11 // pred_check
        %p118 = pneg %p56
      $region14: #{_encode_folded_impl.1} parent=11 // pred_check_branch
        %120 = sbr.rel (%p118) target = $region16
      $region15: #{_encode_folded_impl.1} parent=11 // pred_region
        _
      $region16: #{_encode_folded_impl.1} parent=11 // pred_fallthru
        _
      // Predicated region
      $region17: #{_encode_folded_impl.1} parent=11 // pred_check
        %p121 = pneg %p77
      $region18: #{_encode_folded_impl.1} parent=11 // pred_check_branch
        %123 = sbr.rel (%p121) target = $region20
      $region19: #{_encode_folded_impl.1} parent=11 // pred_region
        _
      $region20: #{_encode_folded_impl.1} parent=11 // pred_fallthru
        _
    $region12: #{_encode_folded_impl.1} parent=5 // pred_fallthru
      _
    %p124 = scmp.lt.s32.totalorder %s9, 2
    // Predicated region
    $region21: #{_encode_folded_impl.1} parent=5 // pred_check
      %p125 = pneg %p124
    $region22: #{_encode_folded_impl.1} parent=5 // pred_check_branch
      %127 = sbr.rel (%p125) target = $region24
    $region23: #{_encode_folded_impl.1} parent=5 // pred_region
      // Predicated region
      $region25: #{_encode_folded_impl.1} parent=23 // pred_check
        %p128 = pneg %p29
      $region26: #{_encode_folded_impl.1} parent=23 // pred_check_branch
        %130 = sbr.rel (%p128) target = $region28
      $region27: #{_encode_folded_impl.1} parent=23 // pred_region
        %s131 = smul.u32 4, %s9
        %p132 = scmp.lt.s32.totalorder %s131, 7
        %s133 = scalar_select %p132, %s131, 7
        %s134 = smul.addr %s133, 8
        %s135 = scalar_lea.vmem %s0, %s134
        %s136 = smul.u32 4, %s9
      $region28: #{_encode_folded_impl.1} parent=23 // pred_fallthru
        _
    $region24: #{_encode_folded_impl.1} parent=5 // pred_fallthru
      _
    %p137 = scmp.le.s32.totalorder 1, %s9
    %p138 = scmp.lt.s32.totalorder %s9, 3
    %p139 = pnand %p137, %p138
    %p140 = pneg %p139
    // Predicated region
    $region29: #{_encode_folded_impl.1} parent=5 // pred_check
      _
    $region30: #{_encode_folded_impl.1} parent=5 // pred_check_branch
      %142 = sbr.rel (%p139) target = $region32
    $region31: #{_encode_folded_impl.1} parent=5 // pred_region
      %s143 = ssub.s32 %s9, 1
      %s144 = smul.u32 4, %s14
      %p145 = scmp.lt.s32.totalorder %s144, 7
      %s146 = scalar_select %p145, %s144, 7
      %s147 = smul.addr %s146, 8
      %s148 = scalar_lea.vmem %s0, %s147
      %p149 = pneg %p35
      %p150 = pneg %p32
      %p151 = pneg %p56
      %p152 = pneg %p53
      %p153 = pneg %p77
      %p154 = pneg %p74
      %p155 = pneg %p103
      %p156 = pneg %p100
      %s157 = smul.u32 4, %s14
      %p158 = scmp.lt.s32.totalorder %s157, 7
      %s159 = scalar_select %p158, %s157, 7
      %s160 = smul.addr %s159, 2
      %s161 = smul.addr %s160, 8
      %s162 = scalar_lea.vmem %s3, %s161
      %s163 = smul.u32 4, %s14
      %p164 = scmp.lt.s32.totalorder %s163, 7
      %s165 = scalar_select %p164, %s163, 7
      %s166 = smul.addr %s165, 8
      %s167 = scalar_lea.vmem %s0, %s166
      %s168 = smul.u32 4, %s14
      %s169 = smul.u32 4, %s14
      %p170 = scmp.lt.s32.totalorder %s169, 7
      %s171 = scalar_select %p170, %s169, 7
      %s172 = smul.addr %s171, 2
      %s173 = smul.addr %s172, 8
      %s174 = scalar_lea.vmem %s3, %s173
      %s175 = smul.u32 4, %s14
      %v176 = vld [vmem:[%s167] sm:$0xff]
      %v177 = vld [vmem:[%s167 + $0x8] sm:$0xff]
      %v178 = vld [vmem:[%s167 + $0x10] sm:$0xff]
      %v179 = vld [vmem:[%s167 + $0x18] sm:$0xff]
      %v180 = vld [vmem:[%s1] sm:$0xff]
      %v181 = vld [vmem:[%s1 + $0x8] sm:$0xff]
      %v182 = vld [vmem:[%s1 + $0x10] sm:$0xff]
      %v183 = vld [vmem:[%s1 + $0x18] sm:$0xff]
      %v184 = vld [vmem:[%s1 + $0x20] sm:$0xff]
      %v185 = vld [vmem:[%s1 + $0x28] sm:$0xff]
      %v186 = vld [vmem:[%s1 + $0x30] sm:$0xff]
      %v187 = vld [vmem:[%s1 + $0x38] sm:$0xff]
      %v188 = vld [vmem:[%s2] sm:$0x3]
      %v190 = vlaneseq
      %v191 = vshrl.u32 %v190, 7
      %v192 = vsub.s32 0, %v191
      %v193 = vrot.slane %v188, %v192
      %v194 = vlaneseq
      %v195 = vshrl.u32 %v194, 7
      %v196 = vsub.s32 1, %v195
      %v197 = vrot.slane %v188, %v196
      %vm200 = vcmask 261120
      %v202 = vsel %vm200, %v176, 0
      %v205 = vsel %vm200, %v177, 0
      %v208 = vsel %vm200, %v178, 0
      %v211 = vsel %vm200, %v179, 0
      %213 = vmatprep.subr.mxu0 %v181
      %214 = vmatpush1.msra.mxu0 %v180
      %215 = vmatprep.subr.mxu0 %v183
      %216 = vmatpush1.msra.mxu0 %v182
      %217 = vmatprep.subr.mxu0 %v185
      %218 = vmatpush1.msra.mxu0 %v184
      %219 = vmatprep.subr.mxu0 %v187
      %220 = vmatpush1.msra.mxu0 %v186
      %221 = vmatprep.subr.mxu0 0.0
      %222 = vmatpush1.msra.mxu0 0.0
      %223 = vmatprep.subr.mxu0 0.0
      %224 = vmatpush1.msra.mxu0 0.0
      %225 = vmatprep.subr.mxu0 0.0
      %226 = vmatpush1.msra.mxu0 0.0
      %227 = vmatprep.subr.mxu0 0.0
      %228 = vmatpush1.msra.mxu0 0.0
      %229 = vmatprep.subr.mxu0 0.0
      %230 = vmatpush1.msra.mxu0 0.0
      %231 = vmatprep.subr.mxu0 0.0
      %232 = vmatpush1.msra.mxu0 0.0
      %233 = vmatprep.subr.mxu0 0.0
      %234 = vmatpush1.msra.mxu0 0.0
      %235 = vmatprep.subr.mxu0 0.0
      %236 = vmatpush1.msra.mxu0 0.0
      %237 = vmatprep.subr.mxu0 0.0
      %238 = vmatpush1.msra.mxu0 0.0
      %239 = vmatprep.subr.mxu0 0.0
      %240 = vmatpush1.msra.mxu0 0.0
      %241 = vmatprep.subr.mxu0 0.0
      %242 = vmatpush1.msra.mxu0 0.0
      %243 = vmatprep.subr.mxu0 0.0
      %244 = vmatpush1.msra.mxu0 0.0
      %245 = vmatprep.subr.mxu0 0.0
      %246 = vmatpush1.msra.mxu0 0.0
      %247 = vmatprep.subr.mxu0 0.0
      %248 = vmatpush1.msra.mxu0 0.0
      %249 = vmatprep.subr.mxu0 0.0
      %250 = vmatpush1.msra.mxu0 0.0
      %251 = vmatprep.subr.mxu0 0.0
      %252 = vmatpush1.msra.mxu0 0.0
      %253 = vmatprep.subr.mxu0 0.0
      %254 = vmatpush1.msra.mxu0 0.0
      %255 = vmatprep.subr.mxu0 0.0
      %256 = vmatpush1.msra.mxu0 0.0
      %257 = vmatprep.subr.mxu0 0.0
      %258 = vmatpush1.msra.mxu0 0.0
      %259 = vmatprep.subr.mxu0 0.0
      %260 = vmatpush1.msra.mxu0 0.0
      %261 = vmatprep.subr.mxu0 0.0
      %262 = vmatpush1.msra.mxu0 0.0
      %263 = vmatprep.subr.mxu0 0.0
      %264 = vmatpush1.msra.mxu0 0.0
      %265 = vmatprep.subr.mxu0 0.0
      %266 = vmatpush1.msra.mxu0 0.0
      %267 = vmatprep.subr.mxu0 0.0
      %268 = vmatpush1.msra.mxu0 0.0
      %269 = vmatprep.subr.mxu0 0.0
      %270 = vmatpush1.msra.mxu0 0.0
      %271 = vmatprep.subr.mxu0 0.0
      %272 = vmatpush1.msra.mxu0 0.0
      %273 = vmatprep.subr.mxu0 0.0
      %274 = vmatpush1.msra.mxu0 0.0
      %275 = vmatprep.subr.mxu0 0.0
      %276 = vmatpush1.msra.mxu0 0.0
      %277 = vmatprep.mubr.f32.mxu0 0.0
      %278 = vmatmul.mubr.f32.gmra.mrb[0].mxu0 %v202
      %v279 = vpop.f32.mrb[0].mxu0
      %v280 = vadd.f32 %v193, %v279
      %v281 = vpop.f32.mrb[0].mxu0
      %v282 = vadd.f32 %v197, %v281
      %283 = vmatprep.mubr.f32.mxu0 0.0
      %284 = vmatmul.mubr.f32.gmra.mrb[0].mxu0 %v205
      %v285 = vpop.f32.mrb[0].mxu0
      %v286 = vadd.f32 %v193, %v285
      %v287 = vpop.f32.mrb[0].mxu0
      %v288 = vadd.f32 %v197, %v287
      %289 = vmatprep.mubr.f32.mxu0 0.0
      %290 = vmatmul.mubr.f32.gmra.mrb[0].mxu0 %v208
      %v291 = vpop.f32.mrb[0].mxu0
      %v292 = vadd.f32 %v193, %v291
      %v293 = vpop.f32.mrb[0].mxu0
      %v294 = vadd.f32 %v197, %v293
      %295 = vmatprep.mubr.f32.mxu0 0.0
      %296 = vmatmul.mubr.f32.gmra.mrb[0].mxu0 %v211
      %v297 = vpop.f32.mrb[0].mxu0
      %v298 = vadd.f32 %v193, %v297
      %v299 = vpop.f32.mrb[0].mxu0
      %v300 = vadd.f32 %v197, %v299
      %301 = vdwg.mxu0
      %302 = vst [vmem:[%s174] sm:$0xff] %v280
      %303 = vst [vmem:[%s174 + $0x8] sm:$0xff] %v282
      %304 = vst [vmem:[%s174 + $0x10] sm:$0xff] %v286
      %305 = vst [vmem:[%s174 + $0x18] sm:$0xff] %v288
      %306 = vst [vmem:[%s174 + $0x20] sm:$0xff] %v292
      %307 = vst [vmem:[%s174 + $0x28] sm:$0xff] %v294
      %308 = vst [vmem:[%s174 + $0x30] sm:$0xff] %v298
      %309 = vst [vmem:[%s174 + $0x38] sm:$0xff] %v300
      %s310 = smul.u32 4, %s14
      %p311 = scmp.lt.s32.totalorder %s310, 7
      %s312 = scalar_select %p311, %s310, 7
      %s313 = smul.addr %s312, 2
      %s314 = smul.addr %s313, 8
      %s315 = scalar_lea.vmem %s3, %s314
      // Predicated region
      $region33: #{_encode_folded_impl.1} parent=31 // pred_check
        %p316 = pneg %p100
      $region34: #{_encode_folded_impl.1} parent=31 // pred_check_branch
        %318 = sbr.rel (%p316) target = $region36
      $region35: #{_encode_folded_impl.1} parent=31 // pred_region
        %s319 = smul.u32 4, %s14
      $region36: #{_encode_folded_impl.1} parent=31 // pred_fallthru
        _
    $region32: #{_encode_folded_impl.1} parent=5 // pred_fallthru
      _
    %p320 = scmp.le.s32.totalorder 2, %s9
    // Predicated region
    $region37: #{_encode_folded_impl.1} parent=5 // pred_check
      %p321 = pneg %p320
    $region38: #{_encode_folded_impl.1} parent=5 // pred_check_branch
      %323 = sbr.rel (%p321) target = $region40
    $region39: #{_encode_folded_impl.1} parent=5 // pred_region
      %s324 = ssub.s32 %s9, 2
      // Predicated region
      $region41: #{_encode_folded_impl.1} parent=39 // pred_check
        %p325 = pneg %p106
      $region42: #{_encode_folded_impl.1} parent=39 // pred_check_branch
        %327 = sbr.rel (%p325) target = $region44
      $region43: #{_encode_folded_impl.1} parent=39 // pred_region
        %s328 = smul.u32 4, %s15
        %p329 = scmp.lt.s32.totalorder %s328, 7
        %s330 = scalar_select %p329, %s328, 7
        %s331 = smul.addr %s330, 2
        %s332 = smul.addr %s331, 8
        %s333 = scalar_lea.vmem %s3, %s332
      $region44: #{_encode_folded_impl.1} parent=39 // pred_fallthru
        _
    $region40: #{_encode_folded_impl.1} parent=5 // pred_fallthru
      _
  $region6: #{_encode_folded_impl.1} parent=0 // loop_footer
    %s13 = sadd.s32 1, %s9
  $region7: #{_encode_folded_impl.1} parent=0 // loop_footer_branch
    %8 = sbr.rel target = $region3
  $region8: #{_encode_folded_impl.1} parent=0 // loop_exit
    _

</llo_original>
